<compile_context>
chip_gen: v7x
topology: tpu7x:2x2x1
jax: 0.10.0
libtpu: 0.0.40
codegen_flags: <defaults>
</compile_context>

<pallas_src>
import functools

import jax
import jax.numpy as jnp
import numpy as np
from jax import lax
from jax.experimental import pallas as pl
from jax.experimental.pallas import tpu as pltpu

_LANES = 128


# ----------------------------- fused Pallas kernel --------------------------------


def quantum_attention_kernel(dt_sref, rrow_ref, rcol_ref, wdp_ref, bdp_ref, e0_ref,
                             wot_ref, bo_ref, logits_ref, score_ref, t_scr, k1_scr,
                             *, seq_len, tile_m):
    """grid = (batch, pass, row_tile).  Pass 0: k1 per row tile into scratch.
    Pass 1: score_target, k2, r_new and the fused diff/out projection."""
    b = pl.program_id(0)
    p = pl.program_id(1)                      # 0 = Euler predictor, 1 = corrector+proj
    t = pl.program_id(2)                      # row tile index
    dt = dt_sref[b]                           # f32 scalar from SMEM (scalar prefetch)
    row0 = pl.multiple_of(t * tile_m, tile_m)

    inv_s = jnp.float32(1.0 / seq_len)

    # Causal mask hoisted: one iota/compare per grid step, reused by tile_score.
    row_ids = row0 + lax.broadcasted_iota(jnp.int32, (tile_m, seq_len), 0)
    col_ids = lax.broadcasted_iota(jnp.int32, (tile_m, seq_len), 1)
    causal = col_ids < row_ids                # strictly-lower triangle (tril(-1))

    def normalize(x):
        # F.normalize(p=2, dim=-1) over a size-1 feature dim: x / max(|x|, 1e-12)
        return x / jnp.maximum(jnp.abs(x), 1e-12)

    def tile_score(col_tile, row_full):
        """scores[i,j] = 1 - |r_i-r_j|/thr_i if (|r_i-r_j| <= thr_i) & (j < i) else 0."""
        # implicit (TM,1)-(1,S) broadcast; Mosaic fuses it into the subtract
        d = jnp.abs(col_tile - row_full)                            # (TM, S)
        # single-pass mean / unbiased variance (one traversal of d)
        sum_d = jnp.sum(d, axis=1, keepdims=True)
        sum_d2 = jnp.sum(d * d, axis=1, keepdims=True)
        mean = sum_d * inv_s
        var = jnp.maximum((sum_d2 - seq_len * mean * mean) / (seq_len - 1), 0.0)
        thr = mean + 2.0 * jnp.sqrt(var)                            # (TM, 1)
        inv_thr = pl.reciprocal(thr)          # exact: approx=True would break 1e-5 check
        mask = (d <= thr) & causal
        return jnp.where(mask, 1.0 - d * inv_thr, 0.0)

    @pl.when(p == 0)
    def _pass_k1():
        r_col_tile = normalize(rcol_ref[pl.ds(row0, tile_m), :])    # (TM, 1)
        r_row = normalize(rrow_ref[...])                            # (1, S)
        s1 = tile_score(r_col_tile, r_row)                          # (TM, S)
        # k1 matvec on VPU + one lane reduce (no useful second lane to pack; keeps the
        # wide f32 MXU pass from becoming the binding unit at large S on v6e).
        k1 = jnp.clip(dt * jnp.sum(s1 * r_row, axis=1, keepdims=True), -1.0, 1.0)
        k1_scr[pl.ds(row0, tile_m), :] = k1
        t_scr[pl.ds(row0, tile_m), :] = r_col_tile + k1             # predictor target

    @pl.when(p == 1)
    def _pass_k2_proj():
        r_col_tile = normalize(rcol_ref[pl.ds(row0, tile_m), :])    # (TM, 1)
        t_col_full = t_scr[...]                                     # (S, 1)
        t_row = jnp.transpose(t_col_full)                           # (1, S), O(S) xpose
        t_col_tile = t_scr[pl.ds(row0, tile_m), :]                  # (TM, 1)
        k1 = k1_scr[pl.ds(row0, tile_m), :]                         # (TM, 1)

        s2 = tile_score(t_col_tile, t_row)                          # == score_target
        score_ref[...] = s2

        # One MXU pass carries both reductions: lane 0 <- target column (k2 matvec),
        # lane 1 <- 1/S (mean(s2, -1) == diff coefficient).  XLU reduce deleted.
        lane_ids = lax.broadcasted_iota(jnp.int32, (seq_len, _LANES), 1)
        rhs = jnp.where(lane_ids == 1, inv_s, t_col_full)           # (S, 128)
        wide = jnp.dot(s2, rhs, preferred_element_type=jnp.float32) # (TM, 128)
        k2 = jnp.clip(dt * wide[:, 0:1], -1.0, 1.0)                 # (TM, 1)
        diff = jnp.clip(wide[:, 1:2], 0.0, 1.0)                     # (TM, 1)

        r_new = normalize(r_col_tile + 0.5 * (k1 + k2))             # (TM, 1)

        # diff_proj(1 -> N-1) + concat([r_new, v]) + out_proj(N -> V), K padded to N:
        # lane 0 of wd_pad/bd_pad is zero, r_new is injected there via the one-hot e0
        # row, so `final` == cat([r_new, v], dim=-1) without an in-kernel concat.
        v_pad = jnp.clip(diff * wdp_ref[...] + bdp_ref[...], -1.0, 1.0)     # (TM, N)
        final = v_pad + r_new * e0_ref[...]                                  # (TM, N)
        logits = jnp.dot(final, wot_ref[...],
                         preferred_element_type=jnp.float32) + bo_ref[...]   # (TM, V)
        logits_ref[...] = jnp.clip(logits, -2.0, 2.0)


# ----------------------------- wrapper --------------------------------------------


def quantum_attention_forward(x, dt, r0, wd, bd, wo, bo, *, tile_m=None):
    """x: (B, S) int tokens, dt: (B,) f32, r0: (V,) f16 buffer,
    wd/bd: diff_proj Linear(1, N-1), wo/bo: out_proj Linear(N, V).
    Returns (logits (B,S,V), score_target (B,S,S), avg_dt device scalar)."""
    B, S = x.shape
    V, N = wo.shape
    assert S >= 2, "unbiased row variance divides by (S - 1)"

    if tile_m is None:
        tile_m = S
        for cand in (512, 256, 128, 64, 32, 16, 8):
            if cand <= S and S % cand == 0:
                tile_m = cand
                break
    assert S % tile_m == 0 and (tile_m % 8 == 0 or tile_m == S)
    num_tiles = S // tile_m

    # Token gather; radial positions presented both lane-dense (row) and sublane-dense
    # (column) so the kernel never does an O(S^2) transpose (layout plumbing only).
    r_vals = r0[x].astype(jnp.float32)                        # (B, S)
    r_row = r_vals.reshape(B, 1, S)
    r_col = r_vals.reshape(B, S, 1)
    dt32 = dt.astype(jnp.float32)                             # (B,) -> scalar prefetch

    # diff_proj weights padded to N lanes (lane 0 zero) + one-hot row for r_new.
    wd_pad = jnp.zeros((1, N), jnp.float32).at[0, 1:].set(wd[:, 0])
    bd_pad = jnp.zeros((1, N), jnp.float32).at[0, 1:].set(bd)
    e0 = jnp.zeros((1, N), jnp.float32).at[0, 0].set(1.0)
    wo_t = wo.T.astype(jnp.float32)                           # (N, V)
    bo_row = bo.reshape(1, V).astype(jnp.float32)

    kernel = functools.partial(quantum_attention_kernel, seq_len=S, tile_m=tile_m)

    # Output blocks are revisited across the pass axis: index (b, t*p) keeps one block
    # resident through pass 0 (untouched) and writes it during pass 1, so no garbage
    # writeback and no extra HBM traffic.
    logits, score_target = pl.pallas_call(
        kernel,
        out_shape=(jax.ShapeDtypeStruct((B, S, V), jnp.float32),
                   jax.ShapeDtypeStruct((B, S, S), jnp.float32)),
        grid_spec=pltpu.PrefetchScalarGridSpec(
            num_scalar_prefetch=1,                            # dt -> SMEM scalars
            grid=(B, 2, num_tiles),
            in_specs=[
                pl.BlockSpec((None, 1, S), lambda b, p, t, dt: (b, 0, 0)),   # r row
                pl.BlockSpec((None, S, 1), lambda b, p, t, dt: (b, 0, 0)),   # r column
                pl.BlockSpec((1, N), lambda b, p, t, dt: (0, 0)),            # wd_pad
                pl.BlockSpec((1, N), lambda b, p, t, dt: (0, 0)),            # bd_pad
                pl.BlockSpec((1, N), lambda b, p, t, dt: (0, 0)),            # e0
                pl.BlockSpec((N, V), lambda b, p, t, dt: (0, 0)),            # Wo^T
                pl.BlockSpec((1, V), lambda b, p, t, dt: (0, 0)),            # bo
            ],
            out_specs=[
                pl.BlockSpec((None, tile_m, V), lambda b, p, t, dt: (b, t * p, 0)),
                pl.BlockSpec((None, tile_m, S), lambda b, p, t, dt: (b, t * p, 0)),
            ],
            scratch_shapes=[pltpu.VMEM((S, 1), jnp.float32),    # predictor target r+k1
                            pltpu.VMEM((S, 1), jnp.float32)]),  # k1
        compiler_params=pltpu.CompilerParams(
            # batch axis feeds v7x's 2 TCs; pass/tile are sequential (scratch carry).
            dimension_semantics=("parallel", "arbitrary", "arbitrary"),
            # explicit scoped-VMEM cap (v5e default is only 16 MiB); raise for large S.
            vmem_limit_bytes=32 * 1024 * 1024),
    )(dt32, r_row, r_col, wd_pad, bd_pad, e0, wo_t, bo_row)

    avg_dt = jnp.mean(dt32)      # device scalar; convert with float() outside if needed
    return logits, score_target, avg_dt


# ----------------------------- pure-JAX reference ----------------------------------


def reference_forward(x, dt, r0, wd, bd, wo, bo):
    B, S = x.shape
    r = r0[x].astype(jnp.float32)[..., None]
    r = r / jnp.maximum(jnp.abs(r), 1e-12)

    def score(re):
        d = jnp.abs(re[:, :, None, 0] - re[:, None, :, 0])     # (B, S, S)
        mean = d.mean(axis=2, keepdims=True)
        std = jnp.std(d, axis=2, keepdims=True, ddof=1)
        thr = mean + 2.0 * std
        causal = jnp.tril(jnp.ones((S, S), bool), k=-1)
        mask = (d <= thr) & causal
        return jnp.where(mask, 1.0 - d / thr, 0.0)

    s1 = score(r)
    k1 = jnp.clip(jnp.einsum('bdk,bk->bd', dt[:, None, None] * s1, r[..., 0])[..., None],
                  -1.0, 1.0)
    tgt = r + k1
    s2 = score(tgt)
    k2 = jnp.clip(jnp.einsum('bdk,bk->bd', dt[:, None, None] * s2, tgt[..., 0])[..., None],
                  -1.0, 1.0)
    rn = r + 0.5 * (k1 + k2)
    rn = rn / jnp.maximum(jnp.abs(rn), 1e-12)
    diff = jnp.clip(s2.mean(axis=-1, keepdims=True), 0.0, 1.0)
    v = jnp.clip(diff @ wd.T + bd, -1.0, 1.0)
    final = jnp.concatenate([rn, v], axis=-1)
    logits = jnp.clip(final @ wo.T + bo, -2.0, 2.0)
    return logits, s2


# ----------------------------- main -------------------------------------------------


if __name__ == "__main__":
    # Small Config: N=32, D=16, vocab_size=256, dt_scale=5e-5; batch=2, seq=8
    B, S, N, D, V = 2, 8, 32, 16, 256
    dt_scale = 5e-5

    key = jax.random.PRNGKey(0)
    k_tok, k_dt, k_wd, k_bd, k_wo, k_bo, k_tok2, k_dt2 = jax.random.split(key, 8)

    # r0 buffer: standardized position indices, stored as fp16 (as in the module)
    pos = jnp.arange(V, dtype=jnp.float32)
    r0 = pos / V
    r0 = (r0 - r0.mean()) / (jnp.std(r0, ddof=1) + 1e-5)
    r0 = r0.astype(jnp.float16)

    # diff_proj: Linear(1, N-1); out_proj: Linear(N, V)  (PyTorch-style uniform init)
    wd = jax.random.uniform(k_wd, (N - 1, 1), jnp.float32, -1.0, 1.0)
    bd = jax.random.uniform(k_bd, (N - 1,), jnp.float32, -1.0, 1.0)
    bound = 1.0 / np.sqrt(N)
    wo = jax.random.uniform(k_wo, (V, N), jnp.float32, -bound, bound)
    bo = jax.random.uniform(k_bo, (V,), jnp.float32, -bound, bound)

    def make_tokens(k, batch, seq):
        toks = jax.random.randint(k, (batch, seq), 0, V)
        # force mixed-sign radial embeddings per row (the PyTorch module itself NaNs if
        # every token in a sequence maps to the same normalized position)
        toks = toks.at[:, 0].set(0)
        toks = toks.at[:, 1].set(V - 1)
        return toks

    def make_dt(k, batch):
        # dt ~ inverse Beta sample (sample_inverse_beta), then forward's extra clamp.
        # TODO(synk): Beta sampling + the host-side avg_dt .item() stay outside the
        # kernel (RNG sampling has no clean in-kernel Pallas equivalent here).
        a_par = (N - 2) / 2.0
        b_par = (D - 1) / 2.0
        beta = jax.random.beta(k, a_par, b_par, (batch,)).astype(jnp.float32)
        d = jnp.clip(1.0 / jnp.clip(beta, 1e-6) * dt_scale, 1e-3, 0.05)
        return jnp.clip(d, 0.0, 1.0)

    x = make_tokens(k_tok, B, S)
    dt = make_dt(k_dt, B)

    logits, score_target, avg_dt = quantum_attention_forward(x, dt, r0, wd, bd, wo, bo)
    jax.block_until_ready((logits, score_target, avg_dt))

    # correctness check vs. pure-JAX reference
    ref_logits, ref_score = reference_forward(x, dt, r0, wd, bd, wo, bo)
    np.testing.assert_allclose(np.asarray(score_target), np.asarray(ref_score),
                               rtol=1e-5, atol=1e-5)
    np.testing.assert_allclose(np.asarray(logits), np.asarray(ref_logits),
                               rtol=1e-5, atol=1e-5)
    assert logits.shape == (B, S, V) and score_target.shape == (B, S, S)
    assert np.isfinite(float(avg_dt))

    # exercise the row-tiled two-pass path with multiple tiles per pass
    S2 = 16
    x2 = make_tokens(k_tok2, B, S2)
    dt2 = make_dt(k_dt2, B)
    logits2, score2, _ = quantum_attention_forward(x2, dt2, r0, wd, bd, wo, bo, tile_m=8)
    jax.block_until_ready((logits2, score2))
    ref_logits2, ref_score2 = reference_forward(x2, dt2, r0, wd, bd, wo, bo)
    np.testing.assert_allclose(np.asarray(score2), np.asarray(ref_score2),
                               rtol=1e-5, atol=1e-5)
    np.testing.assert_allclose(np.asarray(logits2), np.asarray(ref_logits2),
                               rtol=1e-5, atol=1e-5)

    print("KERNEL_OK")
</pallas_src>

<mosaic_0001>
module attributes {stable_mosaic.version = 11 : i64} {
  func.func @quantum_attention_kernel(%arg0: i32, %arg1: i32, %arg2: i32, %arg3: memref<2xf32, #tpu.memory_space<smem>>, %arg4: memref<1x1x8xf32, #tpu.memory_space<vmem>>, %arg5: memref<1x8x1xf32, #tpu.memory_space<vmem>>, %arg6: memref<1x32xf32, #tpu.memory_space<vmem>>, %arg7: memref<1x32xf32, #tpu.memory_space<vmem>>, %arg8: memref<1x32xf32, #tpu.memory_space<vmem>>, %arg9: memref<32x256xf32, #tpu.memory_space<vmem>>, %arg10: memref<1x256xf32, #tpu.memory_space<vmem>>, %arg11: memref<1x8x256xf32, #tpu.memory_space<vmem>>, %arg12: memref<1x8x8xf32, #tpu.memory_space<vmem>>, %arg13: memref<8x1xf32, #tpu.memory_space<vmem>>, %arg14: memref<8x1xf32, #tpu.memory_space<vmem>>) attributes {dimension_semantics = [#tpu.dimension_semantics<parallel>, #tpu.dimension_semantics<arbitrary>, #tpu.dimension_semantics<arbitrary>], iteration_bounds = array<i64: 2, 2, 1>, scalar_prefetch = 1 : i64, scratch_operands = 2 : i64, tpu.core_type = #tpu.core_type<tc>, window_params = [{transform_indices = @transform_0, window_bounds = array<i64: 1, 1, 8>}, {transform_indices = @transform_1, window_bounds = array<i64: 1, 8, 1>}, {pipeline_mode = #tpu.pipeline_mode<synchronous>, transform_indices = @transform_2, window_bounds = array<i64: 1, 32>}, {pipeline_mode = #tpu.pipeline_mode<synchronous>, transform_indices = @transform_3, window_bounds = array<i64: 1, 32>}, {pipeline_mode = #tpu.pipeline_mode<synchronous>, transform_indices = @transform_4, window_bounds = array<i64: 1, 32>}, {pipeline_mode = #tpu.pipeline_mode<synchronous>, transform_indices = @transform_5, window_bounds = array<i64: 32, 256>}, {pipeline_mode = #tpu.pipeline_mode<synchronous>, transform_indices = @transform_6, window_bounds = array<i64: 1, 256>}, {transform_indices = @transform_7, window_bounds = array<i64: 1, 8, 256>}, {transform_indices = @transform_8, window_bounds = array<i64: 1, 8, 8>}]} {
    %0 = arith.index_cast %arg0 : i32 to index
    %1 = memref.load %arg3[%0] : memref<2xf32, #tpu.memory_space<smem>>
    %c8_i32 = arith.constant 8 : i32
    %2 = arith.muli %arg2, %c8_i32 : i32
    %3 = tpu.assume_multiple %2, 8 : i32
    %4 = tpu.iota {dimensions = array<i32: 0>} : vector<8x8xi32>
    %5 = vector.broadcast %3 : i32 to vector<8x8xi32>
    %6 = arith.addi %5, %4 : vector<8x8xi32>
    %7 = tpu.iota {dimensions = array<i32: 1>} : vector<8x8xi32>
    %8 = arith.cmpi slt, %7, %6 : vector<8x8xi32>
    %c0_i32 = arith.constant 0 : i32
    %9 = arith.cmpi eq, %arg1, %c0_i32 : i32
    %10 = arith.extui %9 : i1 to i32
    %cst = arith.constant 1.250000e-01 : f32
    %c0_i32_0 = arith.constant 0 : i32
    %11 = arith.cmpi ne, %10, %c0_i32_0 : i32
    scf.if %11 {
      %c0 = arith.constant 0 : index
      %15 = arith.index_cast %3 : i32 to index
      %c0_3 = arith.constant 0 : index
      %16 = vector.load %arg5[%c0, %15, %c0_3] : memref<1x8x1xf32, #tpu.memory_space<vmem>>, vector<1x8x1xf32>
      %17 = vector.shape_cast %16 : vector<1x8x1xf32> to vector<8x1xf32>
      %18 = math.absf %17 : vector<8x1xf32>
      %cst_4 = arith.constant 9.99999996E-13 : f32
      %19 = vector.broadcast %cst_4 : f32 to vector<8x1xf32>
      %20 = arith.maximumf %18, %19 : vector<8x1xf32>
      %21 = arith.divf %17, %20 : vector<8x1xf32>
      %c0_5 = arith.constant 0 : index
      %c0_6 = arith.constant 0 : index
      %c0_7 = arith.constant 0 : index
      %22 = vector.load %arg4[%c0_5, %c0_6, %c0_7] : memref<1x1x8xf32, #tpu.memory_space<vmem>>, vector<1x1x8xf32>
      %23 = vector.shape_cast %22 : vector<1x1x8xf32> to vector<1x8xf32>
      %24 = math.absf %23 : vector<1x8xf32>
      %cst_8 = arith.constant 9.99999996E-13 : f32
      %25 = vector.broadcast %cst_8 : f32 to vector<1x8xf32>
      %26 = arith.maximumf %24, %25 : vector<1x8xf32>
      %27 = arith.divf %23, %26 : vector<1x8xf32>
      %28 = vector.broadcast %21 : vector<8x1xf32> to vector<8x8xf32>
      %29 = vector.broadcast %27 : vector<1x8xf32> to vector<8x8xf32>
      %30 = arith.subf %28, %29 : vector<8x8xf32>
      %31 = math.absf %30 : vector<8x8xf32>
      %cst_9 = arith.constant dense<0.000000e+00> : vector<8xf32>
      %32 = vector.multi_reduction <add>, %31, %cst_9 [1] : vector<8x8xf32> to vector<8xf32>
      %33 = vector.shape_cast %32 : vector<8xf32> to vector<8x1xf32>
      %34 = arith.mulf %31, %31 : vector<8x8xf32>
      %cst_10 = arith.constant dense<0.000000e+00> : vector<8xf32>
      %35 = vector.multi_reduction <add>, %34, %cst_10 [1] : vector<8x8xf32> to vector<8xf32>
      %36 = vector.shape_cast %35 : vector<8xf32> to vector<8x1xf32>
      %37 = vector.broadcast %cst : f32 to vector<8x1xf32>
      %38 = arith.mulf %33, %37 : vector<8x1xf32>
      %cst_11 = arith.constant 8.000000e+00 : f32
      %39 = vector.broadcast %cst_11 : f32 to vector<8x1xf32>
      %40 = arith.mulf %39, %38 : vector<8x1xf32>
      %41 = arith.mulf %40, %38 : vector<8x1xf32>
      %42 = arith.subf %36, %41 : vector<8x1xf32>
      %cst_12 = arith.constant 7.000000e+00 : f32
      %43 = vector.broadcast %cst_12 : f32 to vector<8x1xf32>
      %44 = arith.divf %42, %43 : vector<8x1xf32>
      %cst_13 = arith.constant 0.000000e+00 : f32
      %45 = vector.broadcast %cst_13 : f32 to vector<8x1xf32>
      %46 = arith.maximumf %44, %45 : vector<8x1xf32>
      %47 = math.sqrt %46 : vector<8x1xf32>
      %cst_14 = arith.constant 2.000000e+00 : f32
      %48 = vector.broadcast %cst_14 : f32 to vector<8x1xf32>
      %49 = arith.mulf %48, %47 : vector<8x1xf32>
      %50 = arith.addf %38, %49 : vector<8x1xf32>
      %51 = tpu.reciprocal %50 : vector<8x1xf32> -> vector<8x1xf32>
      %52 = vector.broadcast %50 : vector<8x1xf32> to vector<8x8xf32>
      %53 = arith.cmpf ole, %31, %52 : vector<8x8xf32>
      %54 = arith.andi %53, %8 : vector<8x8xi1>
      %55 = vector.broadcast %51 : vector<8x1xf32> to vector<8x8xf32>
      %56 = arith.mulf %31, %55 : vector<8x8xf32>
      %cst_15 = arith.constant 1.000000e+00 : f32
      %57 = vector.broadcast %cst_15 : f32 to vector<8x8xf32>
      %58 = arith.subf %57, %56 : vector<8x8xf32>
      %cst_16 = arith.constant 0.000000e+00 : f32
      %59 = vector.broadcast %cst_16 : f32 to vector<8x8xf32>
      %60 = arith.select %54, %58, %59 : vector<8x8xi1>, vector<8x8xf32>
      %61 = vector.broadcast %27 : vector<1x8xf32> to vector<8x8xf32>
      %62 = arith.mulf %60, %61 : vector<8x8xf32>
      %cst_17 = arith.constant dense<0.000000e+00> : vector<8xf32>
      %63 = vector.multi_reduction <add>, %62, %cst_17 [1] : vector<8x8xf32> to vector<8xf32>
      %64 = vector.shape_cast %63 : vector<8xf32> to vector<8x1xf32>
      %65 = vector.broadcast %1 : f32 to vector<8x1xf32>
      %66 = arith.mulf %65, %64 : vector<8x1xf32>
      %cst_18 = arith.constant -1.000000e+00 : f32
      %cst_19 = arith.constant 1.000000e+00 : f32
      %67 = vector.broadcast %cst_18 : f32 to vector<8x1xf32>
      %68 = arith.maximumf %67, %66 : vector<8x1xf32>
      %69 = vector.broadcast %cst_19 : f32 to vector<8x1xf32>
      %70 = arith.minimumf %69, %68 : vector<8x1xf32>
      %71 = arith.index_cast %3 : i32 to index
      %c0_20 = arith.constant 0 : index
      %72 = vector.load %arg14[%71, %c0_20] : memref<8x1xf32, #tpu.memory_space<vmem>>, vector<8x1xf32>
      tpu.vector_store %arg14[%71, %c0_20], %70 {strides = array<i32>} : memref<8x1xf32, #tpu.memory_space<vmem>>, vector<8x1xf32>,
      %73 = arith.addf %21, %70 : vector<8x1xf32>
      %74 = arith.index_cast %3 : i32 to index
      %c0_21 = arith.constant 0 : index
      %75 = vector.load %arg13[%74, %c0_21] : memref<8x1xf32, #tpu.memory_space<vmem>>, vector<8x1xf32>
      tpu.vector_store %arg13[%74, %c0_21], %73 {strides = array<i32>} : memref<8x1xf32, #tpu.memory_space<vmem>>, vector<8x1xf32>,
    } else {
    }
    %c1_i32 = arith.constant 1 : i32
    %12 = arith.cmpi eq, %arg1, %c1_i32 : i32
    %13 = arith.extui %12 : i1 to i32
    %cst_1 = arith.constant 1.250000e-01 : f32
    %c0_i32_2 = arith.constant 0 : i32
    %14 = arith.cmpi ne, %13, %c0_i32_2 : i32
    scf.if %14 {
      %c0 = arith.constant 0 : index
      %15 = arith.index_cast %3 : i32 to index
      %c0_3 = arith.constant 0 : index
      %16 = vector.load %arg5[%c0, %15, %c0_3] : memref<1x8x1xf32, #tpu.memory_space<vmem>>, vector<1x8x1xf32>
      %17 = vector.shape_cast %16 : vector<1x8x1xf32> to vector<8x1xf32>
      %18 = math.absf %17 : vector<8x1xf32>
      %cst_4 = arith.constant 9.99999996E-13 : f32
      %19 = vector.broadcast %cst_4 : f32 to vector<8x1xf32>
      %20 = arith.maximumf %18, %19 : vector<8x1xf32>
      %21 = arith.divf %17, %20 : vector<8x1xf32>
      %c0_5 = arith.constant 0 : index
      %c0_6 = arith.constant 0 : index
      %22 = vector.load %arg13[%c0_5, %c0_6] : memref<8x1xf32, #tpu.memory_space<vmem>>, vector<8x1xf32>
      %23 = tpu.transpose %22, [1, 0] : vector<8x1xf32> -> vector<1x8xf32>
      %24 = arith.index_cast %3 : i32 to index
      %c0_7 = arith.constant 0 : index
      %25 = vector.load %arg13[%24, %c0_7] : memref<8x1xf32, #tpu.memory_space<vmem>>, vector<8x1xf32>
      %26 = arith.index_cast %3 : i32 to index
      %c0_8 = arith.constant 0 : index
      %27 = vector.load %arg14[%26, %c0_8] : memref<8x1xf32, #tpu.memory_space<vmem>>, vector<8x1xf32>
      %28 = vector.broadcast %25 : vector<8x1xf32> to vector<8x8xf32>
      %29 = vector.broadcast %23 : vector<1x8xf32> to vector<8x8xf32>
      %30 = arith.subf %28, %29 : vector<8x8xf32>
      %31 = math.absf %30 : vector<8x8xf32>
      %cst_9 = arith.constant dense<0.000000e+00> : vector<8xf32>
      %32 = vector.multi_reduction <add>, %31, %cst_9 [1] : vector<8x8xf32> to vector<8xf32>
      %33 = vector.shape_cast %32 : vector<8xf32> to vector<8x1xf32>
      %34 = arith.mulf %31, %31 : vector<8x8xf32>
      %cst_10 = arith.constant dense<0.000000e+00> : vector<8xf32>
      %35 = vector.multi_reduction <add>, %34, %cst_10 [1] : vector<8x8xf32> to vector<8xf32>
      %36 = vector.shape_cast %35 : vector<8xf32> to vector<8x1xf32>
      %37 = vector.broadcast %cst_1 : f32 to vector<8x1xf32>
      %38 = arith.mulf %33, %37 : vector<8x1xf32>
      %cst_11 = arith.constant 8.000000e+00 : f32
      %39 = vector.broadcast %cst_11 : f32 to vector<8x1xf32>
      %40 = arith.mulf %39, %38 : vector<8x1xf32>
      %41 = arith.mulf %40, %38 : vector<8x1xf32>
      %42 = arith.subf %36, %41 : vector<8x1xf32>
      %cst_12 = arith.constant 7.000000e+00 : f32
      %43 = vector.broadcast %cst_12 : f32 to vector<8x1xf32>
      %44 = arith.divf %42, %43 : vector<8x1xf32>
      %cst_13 = arith.constant 0.000000e+00 : f32
      %45 = vector.broadcast %cst_13 : f32 to vector<8x1xf32>
      %46 = arith.maximumf %44, %45 : vector<8x1xf32>
      %47 = math.sqrt %46 : vector<8x1xf32>
      %cst_14 = arith.constant 2.000000e+00 : f32
      %48 = vector.broadcast %cst_14 : f32 to vector<8x1xf32>
      %49 = arith.mulf %48, %47 : vector<8x1xf32>
      %50 = arith.addf %38, %49 : vector<8x1xf32>
      %51 = tpu.reciprocal %50 : vector<8x1xf32> -> vector<8x1xf32>
      %52 = vector.broadcast %50 : vector<8x1xf32> to vector<8x8xf32>
      %53 = arith.cmpf ole, %31, %52 : vector<8x8xf32>
      %54 = arith.andi %53, %8 : vector<8x8xi1>
      %55 = vector.broadcast %51 : vector<8x1xf32> to vector<8x8xf32>
      %56 = arith.mulf %31, %55 : vector<8x8xf32>
      %cst_15 = arith.constant 1.000000e+00 : f32
      %57 = vector.broadcast %cst_15 : f32 to vector<8x8xf32>
      %58 = arith.subf %57, %56 : vector<8x8xf32>
      %cst_16 = arith.constant 0.000000e+00 : f32
      %59 = vector.broadcast %cst_16 : f32 to vector<8x8xf32>
      %60 = arith.select %54, %58, %59 : vector<8x8xi1>, vector<8x8xf32>
      %c0_17 = arith.constant 0 : index
      %c0_18 = arith.constant 0 : index
      %c0_19 = arith.constant 0 : index
      %61 = vector.load %arg12[%c0_17, %c0_18, %c0_19] : memref<1x8x8xf32, #tpu.memory_space<vmem>>, vector<1x8x8xf32>
      %62 = vector.shape_cast %61 : vector<1x8x8xf32> to vector<8x8xf32>
      %63 = vector.shape_cast %60 : vector<8x8xf32> to vector<1x8x8xf32>
      tpu.vector_store %arg12[%c0_17, %c0_18, %c0_19], %63 {strides = array<i32>} : memref<1x8x8xf32, #tpu.memory_space<vmem>>, vector<1x8x8xf32>,
      %64 = tpu.iota {dimensions = array<i32: 1>} : vector<8x128xi32>
      %c1_i32_20 = arith.constant 1 : i32
      %65 = vector.broadcast %c1_i32_20 : i32 to vector<8x128xi32>
      %66 = arith.cmpi eq, %64, %65 : vector<8x128xi32>
      %67 = vector.broadcast %cst_1 : f32 to vector<8x128xf32>
      %68 = vector.shape_cast %22 : vector<8x1xf32> to vector<8x1xf32>
      %69 = vector.broadcast %68 : vector<8x1xf32> to vector<8x128xf32>
      %70 = arith.select %66, %67, %69 : vector<8x128xi1>, vector<8x128xf32>
      %cst_21 = arith.constant dense<0.000000e+00> : vector<8x128xf32>
      %71 = tpu.matmul %60, %70, %cst_21 {dimension_numbers = #tpu.dot_dimension_numbers<[1], [0], [0], [1], [0, 0, 1, 1], [], []>} : vector<8x8xf32>, vector<8x128xf32>, vector<8x128xf32> -> vector<8x128xf32>
      %72 = vector.extract_strided_slice %71 {offsets = [0, 0], sizes = [8, 1], strides = [1, 1]} : vector<8x128xf32> to vector<8x1xf32>
      %73 = vector.broadcast %1 : f32 to vector<8x1xf32>
      %74 = arith.mulf %73, %72 : vector<8x1xf32>
      %cst_22 = arith.constant -1.000000e+00 : f32
      %cst_23 = arith.constant 1.000000e+00 : f32
      %75 = vector.broadcast %cst_22 : f32 to vector<8x1xf32>
      %76 = arith.maximumf %75, %74 : vector<8x1xf32>
      %77 = vector.broadcast %cst_23 : f32 to vector<8x1xf32>
      %78 = arith.minimumf %77, %76 : vector<8x1xf32>
      %79 = vector.extract_strided_slice %71 {offsets = [0, 1], sizes = [8, 1], strides = [1, 1]} : vector<8x128xf32> to vector<8x1xf32>
      %cst_24 = arith.constant 0.000000e+00 : f32
      %cst_25 = arith.constant 1.000000e+00 : f32
      %80 = vector.broadcast %cst_24 : f32 to vector<8x1xf32>
      %81 = arith.maximumf %80, %79 : vector<8x1xf32>
      %82 = vector.broadcast %cst_25 : f32 to vector<8x1xf32>
      %83 = arith.minimumf %82, %81 : vector<8x1xf32>
      %84 = arith.addf %27, %78 : vector<8x1xf32>
      %cst_26 = arith.constant 5.000000e-01 : f32
      %85 = vector.broadcast %cst_26 : f32 to vector<8x1xf32>
      %86 = arith.mulf %85, %84 : vector<8x1xf32>
      %87 = arith.addf %21, %86 : vector<8x1xf32>
      %88 = math.absf %87 : vector<8x1xf32>
      %cst_27 = arith.constant 9.99999996E-13 : f32
      %89 = vector.broadcast %cst_27 : f32 to vector<8x1xf32>
      %90 = arith.maximumf %88, %89 : vector<8x1xf32>
      %91 = arith.divf %87, %90 : vector<8x1xf32>
      %c0_28 = arith.constant 0 : index
      %c0_29 = arith.constant 0 : index
      %92 = vector.load %arg6[%c0_28, %c0_29] : memref<1x32xf32, #tpu.memory_space<vmem>>, vector<1x32xf32>
      %93 = vector.broadcast %83 : vector<8x1xf32> to vector<8x32xf32>
      %94 = vector.broadcast %92 : vector<1x32xf32> to vector<8x32xf32>
      %95 = arith.mulf %93, %94 : vector<8x32xf32>
      %c0_30 = arith.constant 0 : index
      %c0_31 = arith.constant 0 : index
      %96 = vector.load %arg7[%c0_30, %c0_31] : memref<1x32xf32, #tpu.memory_space<vmem>>, vector<1x32xf32>
      %97 = vector.broadcast %96 : vector<1x32xf32> to vector<8x32xf32>
      %98 = arith.addf %95, %97 : vector<8x32xf32>
      %cst_32 = arith.constant -1.000000e+00 : f32
      %cst_33 = arith.constant 1.000000e+00 : f32
      %99 = vector.broadcast %cst_32 : f32 to vector<8x32xf32>
      %100 = arith.maximumf %99, %98 : vector<8x32xf32>
      %101 = vector.broadcast %cst_33 : f32 to vector<8x32xf32>
      %102 = arith.minimumf %101, %100 : vector<8x32xf32>
      %c0_34 = arith.constant 0 : index
      %c0_35 = arith.constant 0 : index
      %103 = vector.load %arg8[%c0_34, %c0_35] : memref<1x32xf32, #tpu.memory_space<vmem>>, vector<1x32xf32>
      %104 = vector.broadcast %91 : vector<8x1xf32> to vector<8x32xf32>
      %105 = vector.broadcast %103 : vector<1x32xf32> to vector<8x32xf32>
      %106 = arith.mulf %104, %105 : vector<8x32xf32>
      %107 = arith.addf %102, %106 : vector<8x32xf32>
      %c0_36 = arith.constant 0 : index
      %c0_37 = arith.constant 0 : index
      %108 = vector.load %arg9[%c0_36, %c0_37] : memref<32x256xf32, #tpu.memory_space<vmem>>, vector<32x256xf32>
      %cst_38 = arith.constant dense<0.000000e+00> : vector<8x256xf32>
      %109 = tpu.matmul %107, %108, %cst_38 {dimension_numbers = #tpu.dot_dimension_numbers<[1], [0], [0], [1], [0, 0, 1, 1], [], []>} : vector<8x32xf32>, vector<32x256xf32>, vector<8x256xf32> -> vector<8x256xf32>
      %c0_39 = arith.constant 0 : index
      %c0_40 = arith.constant 0 : index
      %110 = vector.load %arg10[%c0_39, %c0_40] : memref<1x256xf32, #tpu.memory_space<vmem>>, vector<1x256xf32>
      %111 = vector.broadcast %110 : vector<1x256xf32> to vector<8x256xf32>
      %112 = arith.addf %109, %111 : vector<8x256xf32>
      %cst_41 = arith.constant -2.000000e+00 : f32
      %cst_42 = arith.constant 2.000000e+00 : f32
      %113 = vector.broadcast %cst_41 : f32 to vector<8x256xf32>
      %114 = arith.maximumf %113, %112 : vector<8x256xf32>
      %115 = vector.broadcast %cst_42 : f32 to vector<8x256xf32>
      %116 = arith.minimumf %115, %114 : vector<8x256xf32>
      %c0_43 = arith.constant 0 : index
      %c0_44 = arith.constant 0 : index
      %c0_45 = arith.constant 0 : index
      %117 = vector.load %arg11[%c0_43, %c0_44, %c0_45] : memref<1x8x256xf32, #tpu.memory_space<vmem>>, vector<1x8x256xf32>
      %118 = vector.shape_cast %117 : vector<1x8x256xf32> to vector<8x256xf32>
      %119 = vector.shape_cast %116 : vector<8x256xf32> to vector<1x8x256xf32>
      tpu.vector_store %arg11[%c0_43, %c0_44, %c0_45], %119 {strides = array<i32>} : memref<1x8x256xf32, #tpu.memory_space<vmem>>, vector<1x8x256xf32>,
    } else {
    }
    return
  }
  func.func @transform_0(%arg0: i32, %arg1: i32, %arg2: i32, %arg3: memref<2xf32, #tpu.memory_space<smem>>) -> (i32, i32, i32) {
    %c0_i32 = arith.constant 0 : i32
    %c0_i32_0 = arith.constant 0 : i32
    %c0_i32_1 = arith.constant 0 : i32
    return %arg0, %c0_i32, %c0_i32_0 : i32, i32, i32
  }
  func.func @transform_1(%arg0: i32, %arg1: i32, %arg2: i32, %arg3: memref<2xf32, #tpu.memory_space<smem>>) -> (i32, i32, i32) {
    %c0_i32 = arith.constant 0 : i32
    %c0_i32_0 = arith.constant 0 : i32
    %c0_i32_1 = arith.constant 0 : i32
    return %arg0, %c0_i32, %c0_i32_0 : i32, i32, i32
  }
  func.func @transform_2(%arg0: i32, %arg1: i32, %arg2: i32, %arg3: memref<2xf32, #tpu.memory_space<smem>>) -> (i32, i32) {
    %c0_i32 = arith.constant 0 : i32
    %c0_i32_0 = arith.constant 0 : i32
    %c0_i32_1 = arith.constant 0 : i32
    return %c0_i32, %c0_i32_0 : i32, i32
  }
  func.func @transform_3(%arg0: i32, %arg1: i32, %arg2: i32, %arg3: memref<2xf32, #tpu.memory_space<smem>>) -> (i32, i32) {
    %c0_i32 = arith.constant 0 : i32
    %c0_i32_0 = arith.constant 0 : i32
    %c0_i32_1 = arith.constant 0 : i32
    return %c0_i32, %c0_i32_0 : i32, i32
  }
  func.func @transform_4(%arg0: i32, %arg1: i32, %arg2: i32, %arg3: memref<2xf32, #tpu.memory_space<smem>>) -> (i32, i32) {
    %c0_i32 = arith.constant 0 : i32
    %c0_i32_0 = arith.constant 0 : i32
    %c0_i32_1 = arith.constant 0 : i32
    return %c0_i32, %c0_i32_0 : i32, i32
  }
  func.func @transform_5(%arg0: i32, %arg1: i32, %arg2: i32, %arg3: memref<2xf32, #tpu.memory_space<smem>>) -> (i32, i32) {
    %c0_i32 = arith.constant 0 : i32
    %c0_i32_0 = arith.constant 0 : i32
    %c0_i32_1 = arith.constant 0 : i32
    return %c0_i32, %c0_i32_0 : i32, i32
  }
  func.func @transform_6(%arg0: i32, %arg1: i32, %arg2: i32, %arg3: memref<2xf32, #tpu.memory_space<smem>>) -> (i32, i32) {
    %c0_i32 = arith.constant 0 : i32
    %c0_i32_0 = arith.constant 0 : i32
    %c0_i32_1 = arith.constant 0 : i32
    return %c0_i32, %c0_i32_0 : i32, i32
  }
  func.func @transform_7(%arg0: i32, %arg1: i32, %arg2: i32, %arg3: memref<2xf32, #tpu.memory_space<smem>>) -> (i32, i32, i32) {
    %0 = arith.muli %arg2, %arg1 : i32
    %c0_i32 = arith.constant 0 : i32
    %c0_i32_0 = arith.constant 0 : i32
    return %arg0, %0, %c0_i32 : i32, i32, i32
  }
  func.func @transform_8(%arg0: i32, %arg1: i32, %arg2: i32, %arg3: memref<2xf32, #tpu.memory_space<smem>>) -> (i32, i32, i32) {
    %0 = arith.muli %arg2, %arg1 : i32
    %c0_i32 = arith.constant 0 : i32
    %c0_i32_0 = arith.constant 0 : i32
    return %arg0, %0, %c0_i32 : i32, i32, i32
  }
}

</mosaic_0001>

<llo_original>
// kernel: tpu_custom_call.1
$region0: #{tpu_custom_call.1}
  #allocation0 [shape = 'u32[]', space=smem, size = 0x4, offset = 0x4, fixed_abs, tag = 'smem constant byte address 0x4 - core index']
  #allocation1 [shape = 'u32[144,128]{1,0:T(1,128)}', space=vmem, size = 0x12000, scoped, tag = 'internal scratch']
  #allocation2 [shape = 'f32[8,1]{1,0:T(8,128)}', space=vmem, size = 0x1000, scoped, tag = 'scratch operand']
  #allocation3 [shape = 'f32[8,1]{1,0:T(8,128)}', space=vmem, size = 0x1000, scoped, tag = 'scratch operand']
  #allocation4 [shape = 's32[1]{0}', space=sflag, size = 0x4, scoped, tag = 'scoped memory for tpu_custom_call.1']
  #allocation5 [shape = 'u8[512]{0}', space=smem, size = 0x200, scoped, tag = 'prefetched SMEM operand 0']
  %s0 = inlined_call_operand.vmem [shape: f32[2], index: 0, kind: input, shape index: {}]
  %s1 = inlined_call_operand.vmem [shape: f32[2,1,8], index: 1, kind: input, shape index: {}]
  %s2 = inlined_call_operand.vmem [shape: f32[2,8,1], index: 2, kind: input, shape index: {}]
  %s3 = inlined_call_operand.vmem [shape: f32[1,32], index: 3, kind: input, shape index: {}]
  %s4 = inlined_call_operand.vmem [shape: f32[1,32], index: 4, kind: input, shape index: {}]
  %s5 = inlined_call_operand.vmem [shape: f32[1,32], index: 5, kind: input, shape index: {}]
  %s6 = inlined_call_operand.hbm [shape: f32[32,256], index: 6, kind: input, shape index: {}]
  %s7 = inlined_call_operand.vmem [shape: f32[1,256], index: 7, kind: input, shape index: {}]
  %s8 = inlined_call_operand.hbm [shape: f32[2,8,256], index: 8, kind: output, shape index: {0}]
  %s9 = inlined_call_operand.hbm [shape: f32[2,8,8], index: 9, kind: output, shape index: {1}]
  %10 = xla_tuple %s8, %s9
  %s11 = sld [smem:[#allocation0]]
  $region81: #{tpu_custom_call.1} parent=0
    _
  %s13 = ssub.s32 1, %s11
  %s14 = scalar_select 0, %s13, %s11
  %s15 = sshll.u32 %s0, 4
  %s16 = int_to_ptr.vmem [resolvable:$true] %s15
  %18 = dma.vmem_to_smem %s16, 16, [#allocation5], [#allocation4]
  %19 = dma.done [#allocation4], 16
  %20 = sfence
  $region1: #{tpu_custom_call.1} parent=0
    #allocation6 [shape = 'u8[32768]{0}', space=vmem, size = 0x8000, scoped, tag = 'input window, operand 6, single buffered']
    #allocation7 [shape = 's32[2]{0}', space=sflag, size = 0x8, scoped, tag = 'scoped memory for tpu_custom_call.1']
    #allocation8 [shape = 's32[2]{0}', space=sflag, size = 0x8, scoped, tag = 'scoped memory for tpu_custom_call.1']
    #allocation9 [shape = 'u8[16384]{0}', space=vmem, size = 0x4000, scoped, tag = 'output window, operand 0']
    #allocation10 [shape = 'u8[8192]{0}', space=vmem, size = 0x2000, scoped, tag = 'output window, operand 1']
    #allocation11 [shape = 's32[2]{0}', space=sflag, size = 0x8, scoped, tag = 'scoped memory for tpu_custom_call.1']
    %21 = vsyncpa [#allocation7], 0
    %22 = vsyncpa [#allocation8], 0
    %s23 = scalar_lea.sflag [#allocation8], 1
    %24 = vsyncpa %s23, 0
    %25 = vsyncpa [#allocation11], 0
    %s26 = scalar_lea.sflag [#allocation11], 1
    %27 = vsyncpa %s26, 0
    loop: start=0, step=1, limit=6
    $region2: #{tpu_custom_call.1} parent=1 // loop_pre_header
      _
    $region3: #{tpu_custom_call.1} parent=1 // loop_header
      %s29 = sphi 0, %s33
      %p30 = scmp.ge.s32.totalorder %s29, 6
      %s36 = sphi 0, %s55
      %s37 = sphi 0, %s51
      %s38 = sphi 0, %s47
      %s39 = sphi 0, %s36
      %s40 = sphi 0, %s37
      %s41 = sphi 0, %s38
      %s42 = sphi 0, %s39
      %s43 = sphi 0, %s40
      %s44 = sphi 0, %s41
      %s58 = sphi 0, %s60
      %s61 = sphi 0, %s58
      %s62 = sphi 0, %s61
      %s78 = sphi 0, %s62
      %s84 = sphi 0, %s86
      %s87 = sphi 0, %s84
      %s88 = sphi 0, %s87
      %s104 = sphi 0, %s88
      %s108 = sphi 0, %s108
      %s110 = sphi 0, %s108
      %s111 = sphi 0, %s110
      %s125 = sphi 0, %s111
      %s129 = sphi 0, %s129
      %s131 = sphi 0, %s129
      %s132 = sphi 0, %s131
      %s146 = sphi 0, %s132
      %s150 = sphi 0, %s150
      %s152 = sphi 0, %s150
      %s153 = sphi 0, %s152
      %s167 = sphi 0, %s153
      %s171 = sphi 0, %s171
      %s173 = sphi 0, %s171
      %s174 = sphi 0, %s173
      %s188 = sphi 0, %s174
      %s192 = sphi 0, %s192
      %s194 = sphi 0, %s192
      %s195 = sphi 0, %s194
      %s209 = sphi 0, %s195
      %s219 = sphi 0, %s221
      %s222 = sphi 0, %s219
      %s223 = sphi 0, %s222
      %s239 = sphi 0, %s223
      %s249 = sphi 0, %s251
      %s252 = sphi 0, %s249
      %s253 = sphi 0, %s252
      %s269 = sphi 0, %s253
    $region4: #{tpu_custom_call.1} parent=1 // loop_header_branch
      %32 = sbr.rel (%p30) target = $region8
    $region5: #{tpu_custom_call.1} parent=1 // loop_body
      %s34 = ssub.s32 %s29, 1
      %s35 = ssub.s32 %s29, 2
      %s45 = sadd.s32 1, %s38
      %p46 = scmp.ge.s32.totalorder %s45, 1
      %s47 = scalar_select %p46, 0, %s45
      %s48 = sadd.s32 1, %s37
      %s49 = scalar_select %p46, %s48, %s37
      %p50 = scmp.ge.s32.totalorder %s49, 2
      %s51 = scalar_select %p50, 0, %s49
      %s52 = sadd.s32 1, %s36
      %s53 = scalar_select %p50, %s52, %s36
      %p54 = scmp.ge.s32.totalorder %s53, 2
      %s55 = scalar_select %p54, 0, %s53
      %s56 = ssub.s32 %s36, %s55
      %p57 = scmp.eq.s32.totalorder %s56, 0
      %s59 = sadd.s32 %s58, 1
      %s60 = scalar_select %p57, %s58, %s59
      %p63 = pneg %p57
      %p64 = scmp.eq.s32.totalorder %s29, 3
      %p65 = por %p63, %p64
      %p66 = scmp.ne.s32.totalorder %s58, %s61
      %p67 = scmp.eq.s32.totalorder %s29, 0
      %p68 = por %p66, %p67
      %p69 = scmp.ne.s32.totalorder %s58, %s61
      %p70 = scmp.eq.s32.totalorder %s34, 3
      %p71 = por %p69, %p70
      %p72 = scmp.ne.s32.totalorder %s61, %s62
      %p73 = scmp.eq.s32.totalorder %s34, 0
      %p74 = por %p72, %p73
      %p75 = scmp.ne.s32.totalorder %s61, %s62
      %p76 = scmp.eq.s32.totalorder %s35, 3
      %p77 = por %p75, %p76
      %p79 = scmp.ne.s32.totalorder %s62, %s78
      %p80 = scmp.eq.s32.totalorder %s35, 0
      %p81 = por %p79, %p80
      %s82 = ssub.s32 %s36, %s55
      %p83 = scmp.eq.s32.totalorder %s82, 0
      %s85 = sadd.s32 %s84, 1
      %s86 = scalar_select %p83, %s84, %s85
      %p89 = pneg %p83
      %p90 = scmp.eq.s32.totalorder %s29, 3
      %p91 = por %p89, %p90
      %p92 = scmp.ne.s32.totalorder %s84, %s87
      %p93 = scmp.eq.s32.totalorder %s29, 0
      %p94 = por %p92, %p93
      %p95 = scmp.ne.s32.totalorder %s84, %s87
      %p96 = scmp.eq.s32.totalorder %s34, 3
      %p97 = por %p95, %p96
      %p98 = scmp.ne.s32.totalorder %s87, %s88
      %p99 = scmp.eq.s32.totalorder %s34, 0
      %p100 = por %p98, %p99
      %p101 = scmp.ne.s32.totalorder %s87, %s88
      %p102 = scmp.eq.s32.totalorder %s35, 3
      %p103 = por %p101, %p102
      %p105 = scmp.ne.s32.totalorder %s88, %s104
      %p106 = scmp.eq.s32.totalorder %s35, 0
      %p107 = por %p105, %p106
      %s109 = sadd.s32 %s108, 1
      %p112 = scmp.eq.s32.totalorder %s29, 3
      %p113 = scmp.ne.s32.totalorder %s108, %s110
      %p114 = scmp.eq.s32.totalorder %s29, 0
      %p115 = por %p113, %p114
      %p116 = scmp.ne.s32.totalorder %s108, %s110
      %p117 = scmp.eq.s32.totalorder %s34, 3
      %p118 = por %p116, %p117
      %p119 = scmp.ne.s32.totalorder %s110, %s111
      %p120 = scmp.eq.s32.totalorder %s34, 0
      %p121 = por %p119, %p120
      %p122 = scmp.ne.s32.totalorder %s110, %s111
      %p123 = scmp.eq.s32.totalorder %s35, 3
      %p124 = por %p122, %p123
      %p126 = scmp.ne.s32.totalorder %s111, %s125
      %p127 = scmp.eq.s32.totalorder %s35, 0
      %p128 = por %p126, %p127
      %s130 = sadd.s32 %s129, 1
      %p133 = scmp.eq.s32.totalorder %s29, 3
      %p134 = scmp.ne.s32.totalorder %s129, %s131
      %p135 = scmp.eq.s32.totalorder %s29, 0
      %p136 = por %p134, %p135
      %p137 = scmp.ne.s32.totalorder %s129, %s131
      %p138 = scmp.eq.s32.totalorder %s34, 3
      %p139 = por %p137, %p138
      %p140 = scmp.ne.s32.totalorder %s131, %s132
      %p141 = scmp.eq.s32.totalorder %s34, 0
      %p142 = por %p140, %p141
      %p143 = scmp.ne.s32.totalorder %s131, %s132
      %p144 = scmp.eq.s32.totalorder %s35, 3
      %p145 = por %p143, %p144
      %p147 = scmp.ne.s32.totalorder %s132, %s146
      %p148 = scmp.eq.s32.totalorder %s35, 0
      %p149 = por %p147, %p148
      %s151 = sadd.s32 %s150, 1
      %p154 = scmp.eq.s32.totalorder %s29, 3
      %p155 = scmp.ne.s32.totalorder %s150, %s152
      %p156 = scmp.eq.s32.totalorder %s29, 0
      %p157 = por %p155, %p156
      %p158 = scmp.ne.s32.totalorder %s150, %s152
      %p159 = scmp.eq.s32.totalorder %s34, 3
      %p160 = por %p158, %p159
      %p161 = scmp.ne.s32.totalorder %s152, %s153
      %p162 = scmp.eq.s32.totalorder %s34, 0
      %p163 = por %p161, %p162
      %p164 = scmp.ne.s32.totalorder %s152, %s153
      %p165 = scmp.eq.s32.totalorder %s35, 3
      %p166 = por %p164, %p165
      %p168 = scmp.ne.s32.totalorder %s153, %s167
      %p169 = scmp.eq.s32.totalorder %s35, 0
      %p170 = por %p168, %p169
      %s172 = sadd.s32 %s171, 1
      %p175 = scmp.eq.s32.totalorder %s29, 3
      %p176 = scmp.ne.s32.totalorder %s171, %s173
      %p177 = scmp.eq.s32.totalorder %s29, 0
      %p178 = por %p176, %p177
      %p179 = scmp.ne.s32.totalorder %s171, %s173
      %p180 = scmp.eq.s32.totalorder %s34, 3
      %p181 = por %p179, %p180
      %p182 = scmp.ne.s32.totalorder %s173, %s174
      %p183 = scmp.eq.s32.totalorder %s34, 0
      %p184 = por %p182, %p183
      %p185 = scmp.ne.s32.totalorder %s173, %s174
      %p186 = scmp.eq.s32.totalorder %s35, 3
      %p187 = por %p185, %p186
      %p189 = scmp.ne.s32.totalorder %s174, %s188
      %p190 = scmp.eq.s32.totalorder %s35, 0
      %p191 = por %p189, %p190
      %s193 = sadd.s32 %s192, 1
      %p196 = scmp.eq.s32.totalorder %s29, 3
      %p197 = scmp.ne.s32.totalorder %s192, %s194
      %p198 = scmp.eq.s32.totalorder %s29, 0
      %p199 = por %p197, %p198
      %p200 = scmp.ne.s32.totalorder %s192, %s194
      %p201 = scmp.eq.s32.totalorder %s34, 3
      %p202 = por %p200, %p201
      %p203 = scmp.ne.s32.totalorder %s194, %s195
      %p204 = scmp.eq.s32.totalorder %s34, 0
      %p205 = por %p203, %p204
      %p206 = scmp.ne.s32.totalorder %s194, %s195
      %p207 = scmp.eq.s32.totalorder %s35, 3
      %p208 = por %p206, %p207
      %p210 = scmp.ne.s32.totalorder %s195, %s209
      %p211 = scmp.eq.s32.totalorder %s35, 0
      %p212 = por %p210, %p211
      %s213 = smul.u32 %s38, %s37
      %s214 = smul.u32 %s47, %s51
      %s215 = ssub.s32 %s36, %s55
      %s216 = ssub.s32 %s213, %s214
      %s217 = sor.u32 %s215, %s216
      %p218 = scmp.eq.s32.totalorder %s217, 0
      %s220 = sadd.s32 %s219, 1
      %s221 = scalar_select %p218, %s219, %s220
      %p224 = pneg %p218
      %p225 = scmp.eq.s32.totalorder %s29, 3
      %p226 = por %p224, %p225
      %p227 = scmp.ne.s32.totalorder %s219, %s222
      %p228 = scmp.eq.s32.totalorder %s29, 0
      %p229 = por %p227, %p228
      %p230 = scmp.ne.s32.totalorder %s219, %s222
      %p231 = scmp.eq.s32.totalorder %s34, 3
      %p232 = por %p230, %p231
      %p233 = scmp.ne.s32.totalorder %s222, %s223
      %p234 = scmp.eq.s32.totalorder %s34, 0
      %p235 = por %p233, %p234
      %p236 = scmp.ne.s32.totalorder %s222, %s223
      %p237 = scmp.eq.s32.totalorder %s35, 3
      %p238 = por %p236, %p237
      %p240 = scmp.ne.s32.totalorder %s223, %s239
      %p241 = scmp.eq.s32.totalorder %s35, 0
      %p242 = por %p240, %p241
      %s243 = smul.u32 %s38, %s37
      %s244 = smul.u32 %s47, %s51
      %s245 = ssub.s32 %s36, %s55
      %s246 = ssub.s32 %s243, %s244
      %s247 = sor.u32 %s245, %s246
      %p248 = scmp.eq.s32.totalorder %s247, 0
      %s250 = sadd.s32 %s249, 1
      %s251 = scalar_select %p248, %s249, %s250
      %p254 = pneg %p248
      %p255 = scmp.eq.s32.totalorder %s29, 3
      %p256 = por %p254, %p255
      %p257 = scmp.ne.s32.totalorder %s249, %s252
      %p258 = scmp.eq.s32.totalorder %s29, 0
      %p259 = por %p257, %p258
      %p260 = scmp.ne.s32.totalorder %s249, %s252
      %p261 = scmp.eq.s32.totalorder %s34, 3
      %p262 = por %p260, %p261
      %p263 = scmp.ne.s32.totalorder %s252, %s253
      %p264 = scmp.eq.s32.totalorder %s34, 0
      %p265 = por %p263, %p264
      %p266 = scmp.ne.s32.totalorder %s252, %s253
      %p267 = scmp.eq.s32.totalorder %s35, 3
      %p268 = por %p266, %p267
      %p270 = scmp.ne.s32.totalorder %s253, %s269
      %p271 = scmp.eq.s32.totalorder %s35, 0
      %p272 = por %p270, %p271
      %p273 = scmp.le.s32.totalorder 1, %s29
      %p274 = scmp.lt.s32.totalorder %s29, 5
      %p275 = pnand %p273, %p274
      %p276 = pneg %p275
      // Predicated region
      $region9: #{tpu_custom_call.1} parent=5 // pred_check
        _
      $region10: #{tpu_custom_call.1} parent=5 // pred_check_branch
        %278 = sbr.rel (%p275) target = $region12
      $region11: #{tpu_custom_call.1} parent=5 // pred_region
        %s279 = ssub.s32 %s29, 1
        // Predicated region
        $region13: #{tpu_custom_call.1} parent=11 // pred_check
          %p280 = pneg %p121
        $region14: #{tpu_custom_call.1} parent=11 // pred_check_branch
          %282 = sbr.rel (%p280) target = $region16
        $region15: #{tpu_custom_call.1} parent=11 // pred_region
          _
        $region16: #{tpu_custom_call.1} parent=11 // pred_fallthru
          _
        // Predicated region
        $region17: #{tpu_custom_call.1} parent=11 // pred_check
          %p283 = pneg %p142
        $region18: #{tpu_custom_call.1} parent=11 // pred_check_branch
          %285 = sbr.rel (%p283) target = $region20
        $region19: #{tpu_custom_call.1} parent=11 // pred_region
          _
        $region20: #{tpu_custom_call.1} parent=11 // pred_fallthru
          _
        // Predicated region
        $region21: #{tpu_custom_call.1} parent=11 // pred_check
          %p286 = pneg %p163
        $region22: #{tpu_custom_call.1} parent=11 // pred_check_branch
          %288 = sbr.rel (%p286) target = $region24
        $region23: #{tpu_custom_call.1} parent=11 // pred_region
          _
        $region24: #{tpu_custom_call.1} parent=11 // pred_fallthru
          _
        // Predicated region
        $region25: #{tpu_custom_call.1} parent=11 // pred_check
          %p289 = pneg %p184
        $region26: #{tpu_custom_call.1} parent=11 // pred_check_branch
          %291 = sbr.rel (%p289) target = $region28
        $region27: #{tpu_custom_call.1} parent=11 // pred_region
          %s293 = ssub.s32 1024, 1024
          %294 = vsyncadd [#allocation7], %s293
          %s295 = sshll.u32 [#allocation6], 4
          %s296 = int_to_ptr.vmem [resolvable:$true] %s295
          %301 = dma.hbm_to_vmem [thread:$0]  %s6, 1024, %s296, [#allocation7], 256, 256, 16
        $region28: #{tpu_custom_call.1} parent=11 // pred_fallthru
          _
        // Predicated region
        $region29: #{tpu_custom_call.1} parent=11 // pred_check
          %p302 = pneg %p205
        $region30: #{tpu_custom_call.1} parent=11 // pred_check_branch
          %304 = sbr.rel (%p302) target = $region32
        $region31: #{tpu_custom_call.1} parent=11 // pred_region
          _
        $region32: #{tpu_custom_call.1} parent=11 // pred_fallthru
          _
      $region12: #{tpu_custom_call.1} parent=5 // pred_fallthru
        _
      %p305 = scmp.lt.s32.totalorder %s29, 4
      // Predicated region
      $region33: #{tpu_custom_call.1} parent=5 // pred_check
        %p306 = pneg %p305
      $region34: #{tpu_custom_call.1} parent=5 // pred_check_branch
        %308 = sbr.rel (%p306) target = $region36
      $region35: #{tpu_custom_call.1} parent=5 // pred_region
        // Predicated region
        $region37: #{tpu_custom_call.1} parent=35 // pred_check
          %p309 = pneg %p68
        $region38: #{tpu_custom_call.1} parent=35 // pred_check_branch
          %311 = sbr.rel (%p309) target = $region40
        $region39: #{tpu_custom_call.1} parent=35 // pred_region
          %p312 = scmp.lt.s32.totalorder %s36, 1
          %s313 = scalar_select %p312, %s36, 1
          %s314 = scalar_lea.vmem %s1, %s313
        $region40: #{tpu_custom_call.1} parent=35 // pred_fallthru
          _
        // Predicated region
        $region41: #{tpu_custom_call.1} parent=35 // pred_check
          %p315 = pneg %p94
        $region42: #{tpu_custom_call.1} parent=35 // pred_check_branch
          %317 = sbr.rel (%p315) target = $region44
        $region43: #{tpu_custom_call.1} parent=35 // pred_region
          %p318 = scmp.lt.s32.totalorder %s36, 1
          %s319 = scalar_select %p318, %s36, 1
          %s320 = smul.addr %s319, 8
          %s321 = scalar_lea.vmem %s2, %s320
        $region44: #{tpu_custom_call.1} parent=35 // pred_fallthru
          _
      $region36: #{tpu_custom_call.1} parent=5 // pred_fallthru
        _
      %p322 = scmp.le.s32.totalorder 1, %s29
      %p323 = scmp.lt.s32.totalorder %s29, 5
      %p324 = pnand %p322, %p323
      %p325 = pneg %p324
      // Predicated region
      $region45: #{tpu_custom_call.1} parent=5 // pred_check
        _
      $region46: #{tpu_custom_call.1} parent=5 // pred_check_branch
        %327 = sbr.rel (%p324) target = $region48
      $region47: #{tpu_custom_call.1} parent=5 // pred_region
        %s328 = ssub.s32 %s29, 1
        // Predicated region
        $region49: #{tpu_custom_call.1} parent=47 // pred_check
          %p329 = pneg %p184
        $region50: #{tpu_custom_call.1} parent=47 // pred_check_branch
          %331 = sbr.rel (%p329) target = $region52
        $region51: #{tpu_custom_call.1} parent=47 // pred_region
          %332 = dma.done [#allocation7], 1024
        $region52: #{tpu_custom_call.1} parent=47 // pred_fallthru
          _
        %p333 = scmp.lt.s32.totalorder %s39, 1
        %s334 = scalar_select %p333, %s39, 1
        %s335 = scalar_lea.vmem %s1, %s334
        %p336 = pneg %p74
        %p337 = pneg %p71
        %p338 = scmp.lt.s32.totalorder %s39, 1
        %s339 = scalar_select %p338, %s39, 1
        %s340 = smul.addr %s339, 8
        %s341 = scalar_lea.vmem %s2, %s340
        %p342 = pneg %p100
        %p343 = pneg %p97
        %p344 = pneg %p121
        %p345 = pneg %p118
        %p346 = pneg %p142
        %p347 = pneg %p139
        %p348 = pneg %p163
        %p349 = pneg %p160
        %p350 = pneg %p184
        %p351 = pneg %p181
        %p352 = pneg %p205
        %p353 = pneg %p202
        %p354 = pneg %p235
        %p355 = pneg %p232
        %s356 = sand.u32 %s222, 1
        %s357 = scalar_lea.sflag [#allocation8], %s356
        %s358 = sand.u32 %s222, 1
        %s359 = smul.addr %s358, 16
        %s360 = scalar_lea.vmem [#allocation9], %s359
        %p361 = pneg %p265
        %p362 = pneg %p262
        %s363 = sand.u32 %s252, 1
        %s364 = scalar_lea.sflag [#allocation11], %s363
        %s365 = sand.u32 %s252, 1
        %s366 = smul.addr %s365, 8
        %s367 = scalar_lea.vmem [#allocation10], %s366
        %p368 = scmp.lt.s32.totalorder %s39, 1
        %s369 = scalar_select %p368, %s39, 1
        %s370 = scalar_lea.vmem %s1, %s369
        %p371 = scmp.lt.s32.totalorder %s39, 1
        %s372 = scalar_select %p371, %s39, 1
        %s373 = smul.addr %s372, 8
        %s374 = scalar_lea.vmem %s2, %s373
        %s375 = smul.u32 %s41, %s40
        %s376 = smul.u32 %s41, %s40
        %s377 = sld [smem:[#allocation5 + %s39]]
        %s378 = smul.u32 %s41, 8
        %v379 = vlaneseq
        %v380 = vshrl.u32 %v379, 7
        %v381 = vstv %s378
        %v382 = vadd.s32 %v381, %v380
        %v383 = vlaneseq
        %v384 = vand.u32 %v383, 127
        %vm385 = vcmp.lt.s32.totalorder %v384, %v382
        %p386 = scmp.eq.s32.totalorder %s40, 0
        // Predicated region
        $region53: #{tpu_custom_call.1} parent=47 // pred_check
          %p387 = pneg %p386
        $region54: #{tpu_custom_call.1} parent=47 // pred_check_branch
          %389 = sbr.rel (%p387) target = $region56
        $region55: #{tpu_custom_call.1} parent=47 // pred_region
          %s390 = scalar_lea.vmem %s374, %s378
          %v391 = vld [vmem:[%s390] sm:$0xff]
          %v392 = vand.u32 2147483647, %v391
          %v393 = vmax.f32 %v392, 1e-12
          %v394 = vrcp.pop %v393
          %v395 = vmul.f32 %v391, %v394
          %v396 = vld [vmem:[%s370] sm:$0x1]
          %v397 = vand.u32 2147483647, %v396
          %v398 = vmax.f32 %v397, 1e-12
          %v399 = vrcp.pop %v398
          %v400 = vmul.f32 %v396, %v399
          %402 = vset.pattern.permute.xlu0 0
          %403 = vperm.xlu0 %402, %v395
          %v404 = vpop.permute.xlu0 %403
          %v407 = vlaneseq
          %v408 = vshrl.u32 %v407, 7
          %v409 = vsub.s32 0, %v408
          %v410 = vrot.slane %v400, %v409
          %v412 = vsub.f32 %v404, %v410
          %v413 = vand.u32 2147483647, %v412
          %vm414 = vcmask 64512
          %v415 = vsel %vm414, %v413, 0.0
          %416 = vadd.xlane.f32.xlu0 %v415
          %v417 = vpop.xlane.xlu0 %416
          %v418 = vmul.f32 %v413, %v413
          %v419 = vsel %vm414, %v418, 0.0
          %420 = vadd.xlane.f32.xlu0 %v419
          %v421 = vpop.xlane.xlu0 %420
          %v422 = vmul.f32 %v417, 0.125
          %v423 = vmul.f32 %v422, 8.0
          %v424 = vmul.f32 %v423, %v422
          %v425 = vsub.f32 %v421, %v424
          %v426 = vrcp.pop 7.0
          %v427 = vmul.f32 %v425, %v426
          %v428 = vmax.f32 %v427, 0.0
          %v429 = vrsqrt.pop %v428
          %v430 = vmul.f32 %v428, %v429
          %vm431 = vcmp.eq.f32.partialorder %v428, inf
          %v432 = vsel %vm431, %v428, %v430
          %vm433 = vcmp.eq.f32.partialorder %v428, 0.0
          %v434 = vand.u32 %v428, 2147483648
          %v435 = vsel %vm433, %v434, %v432
          %v436 = vmul.f32 %v435, 2.0
          %v437 = vadd.f32 %v422, %v436
          %v438 = vrcp.pop %v437
          %vm439 = vcmp.le.f32.partialorder %v413, %v437
          %vm440 = vmand %vm439, %vm385
          %v441 = vmul.f32 %v413, %v438
          %v442 = vsub.f32 1.0, %v441
          %v443 = vsel %vm440, %v442, 0.0
          %v444 = vmul.f32 %v443, %v410
          %v445 = vsel %vm414, %v444, 0.0
          %446 = vadd.xlane.f32.xlu0 %v445
          %v447 = vpop.xlane.xlu0 %446
          %v448 = vstv %s377
          %v449 = vmul.f32 %v448, %v447
          %v450 = vmax.f32 %v449, -1.0
          %v451 = vmin.f32 %v450, 1.0
          %s452 = scalar_lea.vmem [#allocation3], %s378
          %vm453 = vcmask 7168
          %454 = vst.msk [vmem:[%s452] sm:$0xff] %vm453, %v451
          %v455 = vadd.f32 %v395, %v451
          %s456 = scalar_lea.vmem [#allocation2], %s378
          %457 = vst.msk [vmem:[%s456] sm:$0xff] %vm453, %v455
        $region56: #{tpu_custom_call.1} parent=47 // pred_fallthru
          _
        %p458 = scmp.eq.s32.totalorder %s40, 1
        // Predicated region
        $region57: #{tpu_custom_call.1} parent=47 // pred_check
          %p459 = pneg %p458
        $region58: #{tpu_custom_call.1} parent=47 // pred_check_branch
          %461 = sbr.rel (%p459) target = $region60
        $region59: #{tpu_custom_call.1} parent=47 // pred_region
          %s462 = scalar_lea.vmem %s374, %s378
          %v463 = vld [vmem:[%s462] sm:$0xff]
          %v464 = vand.u32 2147483647, %v463
          %v465 = vmax.f32 %v464, 1e-12
          %v466 = vrcp.pop %v465
          %v467 = vmul.f32 %v463, %v466
          %v468 = vld [vmem:[#allocation2] sm:$0xff]
          %469 = vxpose.xlu0.b32.start [1/16] %v468, 128
          %470 = vxpose.xlu0.b32.cont [2/16] 0.0, 128
          %471 = vxpose.xlu0.b32.cont [3/16] 0.0, 128
          %472 = vxpose.xlu0.b32.cont [4/16] 0.0, 128
          %473 = vxpose.xlu0.b32.cont [5/16] 0.0, 128
          %474 = vxpose.xlu0.b32.cont [6/16] 0.0, 128
          %475 = vxpose.xlu0.b32.cont [7/16] 0.0, 128
          %476 = vxpose.xlu0.b32.cont [8/16] 0.0, 128
          %477 = vxpose.xlu0.b32.cont [9/16] 0.0, 128
          %478 = vxpose.xlu0.b32.cont [10/16] 0.0, 128
          %479 = vxpose.xlu0.b32.cont [11/16] 0.0, 128
          %480 = vxpose.xlu0.b32.cont [12/16] 0.0, 128
          %481 = vxpose.xlu0.b32.cont [13/16] 0.0, 128
          %482 = vxpose.xlu0.b32.cont [14/16] 0.0, 128
          %483 = vxpose.xlu0.b32.cont [15/16] 0.0, 128
          %484 = vxpose.xlu0.b32.end [16/16] 0.0, 128
          %v485 = vpop.trf.xlu0
          %v486 = vpop.trf.xlu0
          %v487 = vpop.trf.xlu0
          %v488 = vpop.trf.xlu0
          %v489 = vpop.trf.xlu0
          %v490 = vpop.trf.xlu0
          %v491 = vpop.trf.xlu0
          %v492 = vpop.trf.xlu0
          %v493 = vpop.trf.xlu0
          %v494 = vpop.trf.xlu0
          %v495 = vpop.trf.xlu0
          %v496 = vpop.trf.xlu0
          %v497 = vpop.trf.xlu0
          %v498 = vpop.trf.xlu0
          %v499 = vpop.trf.xlu0
          %v500 = vpop.trf.xlu0
          %s501 = scalar_lea.vmem [#allocation2], %s378
          %v502 = vld [vmem:[%s501] sm:$0xff]
          %s503 = scalar_lea.vmem [#allocation3], %s378
          %v504 = vld [vmem:[%s503] sm:$0xff]
          %506 = vset.pattern.permute.xlu0 0
          %507 = vperm.xlu0 %506, %v502
          %v508 = vpop.permute.xlu0 %507
          %v510 = vlaneseq
          %v511 = vshrl.u32 %v510, 7
          %v512 = vsub.s32 0, %v511
          %v513 = vrot.slane %v485, %v512
          %v514 = vsub.f32 %v508, %v513
          %v515 = vand.u32 2147483647, %v514
          %vm516 = vcmask 64512
          %v517 = vsel %vm516, %v515, 0.0
          %518 = vadd.xlane.f32.xlu0 %v517
          %v519 = vpop.xlane.xlu0 %518
          %v520 = vmul.f32 %v515, %v515
          %v521 = vsel %vm516, %v520, 0.0
          %522 = vadd.xlane.f32.xlu0 %v521
          %v523 = vpop.xlane.xlu0 %522
          %v524 = vmul.f32 %v519, 0.125
          %v525 = vmul.f32 %v524, 8.0
          %v526 = vmul.f32 %v525, %v524
          %v527 = vsub.f32 %v523, %v526
          %v528 = vrcp.pop 7.0
          %v529 = vmul.f32 %v527, %v528
          %v530 = vmax.f32 %v529, 0.0
          %v531 = vrsqrt.pop %v530
          %v532 = vmul.f32 %v530, %v531
          %vm533 = vcmp.eq.f32.partialorder %v530, inf
          %v534 = vsel %vm533, %v530, %v532
          %vm535 = vcmp.eq.f32.partialorder %v530, 0.0
          %v536 = vand.u32 %v530, 2147483648
          %v537 = vsel %vm535, %v536, %v534
          %v538 = vmul.f32 %v537, 2.0
          %v539 = vadd.f32 %v524, %v538
          %v540 = vrcp.pop %v539
          %vm541 = vcmp.le.f32.partialorder %v515, %v539
          %vm542 = vmand %vm541, %vm385
          %v543 = vmul.f32 %v515, %v540
          %v544 = vsub.f32 1.0, %v543
          %v545 = vsel %vm542, %v544, 0.0
          %546 = vst.msk [vmem:[%s367] sm:$0xff] %vm516, %v545
          %vm547 = vcmp.eq.s32.totalorder %v384, 1
          %549 = vset.pattern.permute.xlu0 0
          %550 = vperm.xlu0 %549, %v468
          %v551 = vpop.permute.xlu0 %550
          %v553 = vsel %vm547, 0.125, %v551
          %v555 = vsel %vm516, %v545, 0
          %557 = vmatprep.subr.mxu0 0.0
          %558 = vmatpush1.msra.mxu0 %v553
          %559 = vmatprep.subr.mxu0 0.0
          %560 = vmatpush1.msra.mxu0 0.0
          %561 = vmatprep.subr.mxu0 0.0
          %562 = vmatpush1.msra.mxu0 0.0
          %563 = vmatprep.subr.mxu0 0.0
          %564 = vmatpush1.msra.mxu0 0.0
          %565 = vmatprep.subr.mxu0 0.0
          %566 = vmatpush1.msra.mxu0 0.0
          %567 = vmatprep.subr.mxu0 0.0
          %568 = vmatpush1.msra.mxu0 0.0
          %569 = vmatprep.subr.mxu0 0.0
          %570 = vmatpush1.msra.mxu0 0.0
          %571 = vmatprep.subr.mxu0 0.0
          %572 = vmatpush1.msra.mxu0 0.0
          %573 = vmatprep.subr.mxu0 0.0
          %574 = vmatpush1.msra.mxu0 0.0
          %575 = vmatprep.subr.mxu0 0.0
          %576 = vmatpush1.msra.mxu0 0.0
          %577 = vmatprep.subr.mxu0 0.0
          %578 = vmatpush1.msra.mxu0 0.0
          %579 = vmatprep.subr.mxu0 0.0
          %580 = vmatpush1.msra.mxu0 0.0
          %581 = vmatprep.subr.mxu0 0.0
          %582 = vmatpush1.msra.mxu0 0.0
          %583 = vmatprep.subr.mxu0 0.0
          %584 = vmatpush1.msra.mxu0 0.0
          %585 = vmatprep.subr.mxu0 0.0
          %586 = vmatpush1.msra.mxu0 0.0
          %587 = vmatprep.subr.mxu0 0.0
          %588 = vmatpush1.msra.mxu0 0.0
          %589 = vmatprep.subr.mxu0 0.0
          %590 = vmatpush1.msra.mxu0 0.0
          %591 = vmatprep.subr.mxu0 0.0
          %592 = vmatpush1.msra.mxu0 0.0
          %593 = vmatprep.subr.mxu0 0.0
          %594 = vmatpush1.msra.mxu0 0.0
          %595 = vmatprep.subr.mxu0 0.0
          %596 = vmatpush1.msra.mxu0 0.0
          %597 = vmatprep.subr.mxu0 0.0
          %598 = vmatpush1.msra.mxu0 0.0
          %599 = vmatprep.subr.mxu0 0.0
          %600 = vmatpush1.msra.mxu0 0.0
          %601 = vmatprep.subr.mxu0 0.0
          %602 = vmatpush1.msra.mxu0 0.0
          %603 = vmatprep.subr.mxu0 0.0
          %604 = vmatpush1.msra.mxu0 0.0
          %605 = vmatprep.subr.mxu0 0.0
          %606 = vmatpush1.msra.mxu0 0.0
          %607 = vmatprep.subr.mxu0 0.0
          %608 = vmatpush1.msra.mxu0 0.0
          %609 = vmatprep.subr.mxu0 0.0
          %610 = vmatpush1.msra.mxu0 0.0
          %611 = vmatprep.subr.mxu0 0.0
          %612 = vmatpush1.msra.mxu0 0.0
          %613 = vmatprep.subr.mxu0 0.0
          %614 = vmatpush1.msra.mxu0 0.0
          %615 = vmatprep.subr.mxu0 0.0
          %616 = vmatpush1.msra.mxu0 0.0
          %617 = vmatprep.subr.mxu0 0.0
          %618 = vmatpush1.msra.mxu0 0.0
          %619 = vmatprep.subr.mxu0 0.0
          %620 = vmatpush1.msra.mxu0 0.0
          %621 = vmatprep.mubr.f32.mxu0 0.0
          %622 = vmatmul.mubr.f32.gmra.mrb[0].mxu0 %v555
          %v623 = vpop.f32.mrb[0].mxu0
          %v624 = vadd.f32 0.0, %v623
          %v625 = vpop.f32.mrb[0].mxu0
          %626 = vdwg.mxu0
          %v627 = vstv %s377
          %v628 = vmul.f32 %v627, %v624
          %v629 = vmax.f32 %v628, -1.0
          %v630 = vmin.f32 %v629, 1.0
          %v631 = vmax.f32 %v624, 0.0
          %v632 = vmin.f32 %v631, 1.0
          %v633 = vadd.f32 %v504, %v630
          %v634 = vmul.f32 %v633, 0.5
          %v635 = vadd.f32 %v467, %v634
          %v636 = vand.u32 2147483647, %v635
          %v637 = vmax.f32 %v636, 1e-12
          %v638 = vrcp.pop %v637
          %v639 = vmul.f32 %v635, %v638
          %v640 = vld [vmem:[%s3] sm:$0x1]
          %642 = vset.pattern.permute.xlu0 1
          %643 = vperm.xlu0 %642, %v632
          %v644 = vpop.permute.xlu0 %643
          %v647 = vlaneseq
          %v648 = vshrl.u32 %v647, 7
          %v649 = vsub.s32 0, %v648
          %v650 = vrot.slane %v640, %v649
          %v652 = vmul.f32 %v644, %v650
          %v653 = vld [vmem:[%s4] sm:$0x1]
          %v655 = vlaneseq
          %v656 = vshrl.u32 %v655, 7
          %v657 = vsub.s32 0, %v656
          %v658 = vrot.slane %v653, %v657
          %v660 = vadd.f32 %v652, %v658
          %v661 = vmax.f32 %v660, -1.0
          %v662 = vmin.f32 %v661, 1.0
          %v663 = vld [vmem:[%s5] sm:$0x1]
          %665 = vset.pattern.permute.xlu0 0
          %666 = vperm.xlu0 %665, %v639
          %v667 = vpop.permute.xlu0 %666
          %v670 = vlaneseq
          %v671 = vshrl.u32 %v670, 7
          %v672 = vsub.s32 0, %v671
          %v673 = vrot.slane %v663, %v672
          %v675 = vmul.f32 %v667, %v673
          %v676 = vadd.f32 %v662, %v675
          %v677 = vld [vmem:[#allocation6] sm:$0xff]
          %v678 = vld [vmem:[#allocation6 + $0x8] sm:$0xff]
          %v679 = vld [vmem:[#allocation6 + $0x10] sm:$0xff]
          %v680 = vld [vmem:[#allocation6 + $0x18] sm:$0xff]
          %v681 = vld [vmem:[#allocation6 + $0x20] sm:$0xff]
          %v682 = vld [vmem:[#allocation6 + $0x28] sm:$0xff]
          %v683 = vld [vmem:[#allocation6 + $0x30] sm:$0xff]
          %v684 = vld [vmem:[#allocation6 + $0x38] sm:$0xff]
          %v685 = vld [vmem:[%s7] sm:$0x3]
          %v687 = vlaneseq
          %v688 = vshrl.u32 %v687, 7
          %v689 = vsub.s32 0, %v688
          %v690 = vrot.slane %v685, %v689
          %v691 = vlaneseq
          %v692 = vshrl.u32 %v691, 7
          %v693 = vsub.s32 1, %v692
          %v694 = vrot.slane %v685, %v693
          %vm697 = vcmask 261120
          %v699 = vsel %vm697, %v676, 0
          %701 = vmatprep.subr.mxu0 %v678
          %702 = vmatpush1.msra.mxu0 %v677
          %703 = vmatprep.subr.mxu0 %v680
          %704 = vmatpush1.msra.mxu0 %v679
          %705 = vmatprep.subr.mxu0 %v682
          %706 = vmatpush1.msra.mxu0 %v681
          %707 = vmatprep.subr.mxu0 %v684
          %708 = vmatpush1.msra.mxu0 %v683
          %709 = vmatprep.subr.mxu0 0.0
          %710 = vmatpush1.msra.mxu0 0.0
          %711 = vmatprep.subr.mxu0 0.0
          %712 = vmatpush1.msra.mxu0 0.0
          %713 = vmatprep.subr.mxu0 0.0
          %714 = vmatpush1.msra.mxu0 0.0
          %715 = vmatprep.subr.mxu0 0.0
          %716 = vmatpush1.msra.mxu0 0.0
          %717 = vmatprep.subr.mxu0 0.0
          %718 = vmatpush1.msra.mxu0 0.0
          %719 = vmatprep.subr.mxu0 0.0
          %720 = vmatpush1.msra.mxu0 0.0
          %721 = vmatprep.subr.mxu0 0.0
          %722 = vmatpush1.msra.mxu0 0.0
          %723 = vmatprep.subr.mxu0 0.0
          %724 = vmatpush1.msra.mxu0 0.0
          %725 = vmatprep.subr.mxu0 0.0
          %726 = vmatpush1.msra.mxu0 0.0
          %727 = vmatprep.subr.mxu0 0.0
          %728 = vmatpush1.msra.mxu0 0.0
          %729 = vmatprep.subr.mxu0 0.0
          %730 = vmatpush1.msra.mxu0 0.0
          %731 = vmatprep.subr.mxu0 0.0
          %732 = vmatpush1.msra.mxu0 0.0
          %733 = vmatprep.subr.mxu0 0.0
          %734 = vmatpush1.msra.mxu0 0.0
          %735 = vmatprep.subr.mxu0 0.0
          %736 = vmatpush1.msra.mxu0 0.0
          %737 = vmatprep.subr.mxu0 0.0
          %738 = vmatpush1.msra.mxu0 0.0
          %739 = vmatprep.subr.mxu0 0.0
          %740 = vmatpush1.msra.mxu0 0.0
          %741 = vmatprep.subr.mxu0 0.0
          %742 = vmatpush1.msra.mxu0 0.0
          %743 = vmatprep.subr.mxu0 0.0
          %744 = vmatpush1.msra.mxu0 0.0
          %745 = vmatprep.subr.mxu0 0.0
          %746 = vmatpush1.msra.mxu0 0.0
          %747 = vmatprep.subr.mxu0 0.0
          %748 = vmatpush1.msra.mxu0 0.0
          %749 = vmatprep.subr.mxu0 0.0
          %750 = vmatpush1.msra.mxu0 0.0
          %751 = vmatprep.subr.mxu0 0.0
          %752 = vmatpush1.msra.mxu0 0.0
          %753 = vmatprep.subr.mxu0 0.0
          %754 = vmatpush1.msra.mxu0 0.0
          %755 = vmatprep.subr.mxu0 0.0
          %756 = vmatpush1.msra.mxu0 0.0
          %757 = vmatprep.subr.mxu0 0.0
          %758 = vmatpush1.msra.mxu0 0.0
          %759 = vmatprep.subr.mxu0 0.0
          %760 = vmatpush1.msra.mxu0 0.0
          %761 = vmatprep.subr.mxu0 0.0
          %762 = vmatpush1.msra.mxu0 0.0
          %763 = vmatprep.subr.mxu0 0.0
          %764 = vmatpush1.msra.mxu0 0.0
          %765 = vmatprep.mubr.f32.mxu0 0.0
          %766 = vmatmul.mubr.f32.gmra.mrb[0].mxu0 %v699
          %v767 = vpop.f32.mrb[0].mxu0
          %v768 = vadd.f32 %v690, %v767
          %v769 = vpop.f32.mrb[0].mxu0
          %v770 = vadd.f32 %v694, %v769
          %771 = vdwg.mxu0
          %v772 = vmax.f32 %v768, -2.0
          %v773 = vmax.f32 %v770, -2.0
          %v774 = vmin.f32 %v772, 2.0
          %v775 = vmin.f32 %v773, 2.0
          %776 = vst [vmem:[%s360] sm:$0xff] %v774
          %777 = vst [vmem:[%s360 + $0x8] sm:$0xff] %v775
        $region60: #{tpu_custom_call.1} parent=47 // pred_fallthru
          _
        %s778 = sand.u32 %s222, 1
        %s779 = scalar_lea.sflag [#allocation8], %s778
        %s780 = sand.u32 %s222, 1
        %s781 = smul.addr %s780, 16
        %s782 = scalar_lea.vmem [#allocation9], %s781
        %s783 = sand.u32 %s252, 1
        %s784 = scalar_lea.sflag [#allocation11], %s783
        %s785 = sand.u32 %s252, 1
        %s786 = smul.addr %s785, 8
        %s787 = scalar_lea.vmem [#allocation10], %s786
        // Predicated region
        $region61: #{tpu_custom_call.1} parent=47 // pred_check
          %p788 = pneg %p232
        $region62: #{tpu_custom_call.1} parent=47 // pred_check_branch
          %790 = sbr.rel (%p788) target = $region64
        $region63: #{tpu_custom_call.1} parent=47 // pred_region
          %s791 = smul.u32 %s41, %s40
          %s793 = ssub.s32 256, 256
          %794 = vsyncadd %s779, %s793
          %s795 = smul.addr %s791, 2
          %s796 = smul.addr %s39, 2
          %s797 = sadd.s32 %s795, %s796
          %s798 = smul.addr %s797, 128
          %s799 = scalar_lea.hbm %s8, %s798
          %s801 = sshll.u32 %s782, 4
          %s802 = int_to_ptr.vmem [resolvable:$true] %s801
          %804 = dma.vmem_to_hbm [thread:$0]  %s802, 256, %s799, %s779
        $region64: #{tpu_custom_call.1} parent=47 // pred_fallthru
          _
        // Predicated region
        $region65: #{tpu_custom_call.1} parent=47 // pred_check
          %p805 = pneg %p262
        $region66: #{tpu_custom_call.1} parent=47 // pred_check_branch
          %807 = sbr.rel (%p805) target = $region68
        $region67: #{tpu_custom_call.1} parent=47 // pred_region
          %s808 = smul.u32 %s41, %s40
          %s810 = ssub.s32 128, 128
          %811 = vsyncadd %s784, %s810
          %s812 = sadd.s32 %s808, %s39
          %s813 = smul.addr %s812, 128
          %s814 = scalar_lea.hbm %s9, %s813
          %s816 = sshll.u32 %s787, 4
          %s817 = int_to_ptr.vmem [resolvable:$true] %s816
          %819 = dma.vmem_to_hbm [thread:$0]  %s817, 128, %s814, %s784
        $region68: #{tpu_custom_call.1} parent=47 // pred_fallthru
          _
      $region48: #{tpu_custom_call.1} parent=5 // pred_fallthru
        _
      %p820 = scmp.le.s32.totalorder 2, %s29
      // Predicated region
      $region69: #{tpu_custom_call.1} parent=5 // pred_check
        %p821 = pneg %p820
      $region70: #{tpu_custom_call.1} parent=5 // pred_check_branch
        %823 = sbr.rel (%p821) target = $region72
      $region71: #{tpu_custom_call.1} parent=5 // pred_region
        %s824 = ssub.s32 %s29, 2
        // Predicated region
        $region73: #{tpu_custom_call.1} parent=71 // pred_check
          %p825 = pneg %p238
        $region74: #{tpu_custom_call.1} parent=71 // pred_check_branch
          %827 = sbr.rel (%p825) target = $region76
        $region75: #{tpu_custom_call.1} parent=71 // pred_region
          %s828 = sand.u32 %s223, 1
          %s829 = scalar_lea.sflag [#allocation8], %s828
          %s830 = sand.u32 %s223, 1
          %s831 = smul.addr %s830, 16
          %s832 = scalar_lea.vmem [#allocation9], %s831
          %833 = dma.done %s829, 256
        $region76: #{tpu_custom_call.1} parent=71 // pred_fallthru
          _
        // Predicated region
        $region77: #{tpu_custom_call.1} parent=71 // pred_check
          %p834 = pneg %p268
        $region78: #{tpu_custom_call.1} parent=71 // pred_check_branch
          %836 = sbr.rel (%p834) target = $region80
        $region79: #{tpu_custom_call.1} parent=71 // pred_region
          %s837 = sand.u32 %s253, 1
          %s838 = scalar_lea.sflag [#allocation11], %s837
          %s839 = sand.u32 %s253, 1
          %s840 = smul.addr %s839, 8
          %s841 = scalar_lea.vmem [#allocation10], %s840
          %842 = dma.done %s838, 128
        $region80: #{tpu_custom_call.1} parent=71 // pred_fallthru
          _
      $region72: #{tpu_custom_call.1} parent=5 // pred_fallthru
        _
    $region6: #{tpu_custom_call.1} parent=1 // loop_footer
      %s33 = sadd.s32 1, %s29
    $region7: #{tpu_custom_call.1} parent=1 // loop_footer_branch
      %28 = sbr.rel target = $region3
    $region8: #{tpu_custom_call.1} parent=1 // loop_exit
      _
    %843 = vsyncpa [#allocation7], 1
    %s844 = scalar_lea.sflag [#allocation7], 1
    %845 = vsyncpa %s844, 1
    %846 = vsyncpa [#allocation8], 1
    %s847 = scalar_lea.sflag [#allocation8], 1
    %848 = vsyncpa %s847, 1
    %849 = vsyncpa [#allocation11], 1
    %s850 = scalar_lea.sflag [#allocation11], 1
    %851 = vsyncpa %s850, 1

</llo_original>
